<compile_context>
chip_gen: v7x
topology: tpu7x:2x2x1
jax: 0.10.0
libtpu: 0.0.40
codegen_flags: <defaults>
</compile_context>

<pallas_src>
import jax
import jax.numpy as jnp
from jax.experimental import pallas as pl
from jax.experimental.pallas import tpu as pltpu


def _outconv_kernel(w_ref, b_ref, x_ref, o_ref):
    # w_ref: (C_out, C_in)    b_ref: (C_out, 1)
    # x_ref: (C_in, TILE_L)   o_ref: (C_out, TILE_L)
    acc = jnp.dot(w_ref[...], x_ref[...], preferred_element_type=jnp.float32)
    o_ref[...] = (acc + b_ref[...]).astype(o_ref.dtype)


def _choose_tile_l(L, c_in, c_out, itemsize, *, max_tile=4096,
                   vmem_budget_bytes=8 << 20):
    """Pick the lane-tile for the L dimension.

    Small L: a single full-extent block (legal because the block equals the
    full array dim). Large L: the largest multiple of 128 that keeps the
    double-buffered (input + output) activation tiles within a conservative
    VMEM budget, capped at `max_tile`.
    """
    if L <= max_tile:
        return L
    # Double-buffered in + out tiles: 2 * (C_in + C_out) * tile_l * itemsize.
    budget_tile = vmem_budget_bytes // (2 * (c_in + c_out) * itemsize)
    tile = min(max_tile, int(budget_tile))
    tile = max(128, (tile // 128) * 128)   # lane-aligned
    return tile


def outconv(x_ncl, weight, bias, *, tile_l=None):
    """1x1 Conv1d (torch nn.Conv1d(in, out, kernel_size=1) forward).

    x_ncl  : (B, C_in, L)      float32
    weight : (C_out, C_in, 1)  float32  (torch Conv1d weight shape)
    bias   : (C_out,)          float32
    returns: (B, C_out, L)     float32
    """
    B, C_in, L = x_ncl.shape
    C_out = weight.shape[0]

    w2d = weight[:, :, 0]             # (C_out, C_in)
    b2d = bias.reshape(C_out, 1)      # (C_out, 1) -> broadcast over lanes

    itemsize = jnp.dtype(x_ncl.dtype).itemsize
    if tile_l is None:
        tile_l = _choose_tile_l(L, C_in, C_out, itemsize)

    # Pad L up to a multiple of tile_l (zeros; padded lanes sliced off below).
    # No copy is made when L already divides evenly.
    n_l = pl.cdiv(L, tile_l)
    L_pad = n_l * tile_l
    if L_pad != L:
        x_ncl = jnp.pad(x_ncl, ((0, 0), (0, 0), (0, L_pad - L)))

    cost = pl.CostEstimate(
        flops=2 * B * L_pad * C_in * C_out,
        transcendentals=0,
        bytes_accessed=itemsize * (B * L_pad * C_in + B * L_pad * C_out
                                   + C_in * C_out + C_out),
    )

    out = pl.pallas_call(
        _outconv_kernel,
        out_shape=jax.ShapeDtypeStruct((B, C_out, L_pad), x_ncl.dtype),
        grid_spec=pltpu.PrefetchScalarGridSpec(
            num_scalar_prefetch=0,
            grid=(B, n_l),
            in_specs=[
                # Weight and bias: resident in VMEM across all grid points.
                pl.BlockSpec((C_out, C_in), lambda b, l: (0, 0)),
                pl.BlockSpec((C_out, 1), lambda b, l: (0, 0)),
                # Activations: stream (C_in, tile_l) tiles, batch dim squeezed.
                pl.BlockSpec((None, C_in, tile_l), lambda b, l: (b, 0, l)),
            ],
            out_specs=pl.BlockSpec((None, C_out, tile_l),
                                   lambda b, l: (b, 0, l)),
        ),
        compiler_params=pltpu.CompilerParams(
            dimension_semantics=("parallel", "parallel"),
            vmem_limit_bytes=64 << 20),
        cost_estimate=cost,
    )(w2d, b2d, x_ncl)

    if L_pad != L:
        out = out[:, :, :L]
    return out


if __name__ == "__main__":
    key = jax.random.PRNGKey(0)
    kx, kw, kb = jax.random.split(key, 3)

    B, C_in, C_out, L = 2, 4, 8, 16

    x = jax.random.normal(kx, (B, C_in, L), dtype=jnp.float32)
    # Deterministic synthetic params matching nn.Conv1d(in, out, kernel_size=1).
    bound = 1.0 / (C_in ** 0.5)
    weight = jax.random.uniform(kw, (C_out, C_in, 1), dtype=jnp.float32,
                                minval=-bound, maxval=bound)
    bias = jax.random.uniform(kb, (C_out,), dtype=jnp.float32,
                              minval=-bound, maxval=bound)

    out = outconv(x, weight, bias)
    out = jax.block_until_ready(out)

    # Pure-JAX reference (einsum over channels).
    ref = jnp.einsum("oi,bil->bol", weight[:, :, 0], x) + bias[None, :, None]
    assert out.shape == (B, C_out, L)
    assert jnp.allclose(out, ref, atol=1e-5, rtol=1e-5)

    # Exercise the tiled path with L an exact multiple of 128 (no padding copy).
    L1 = 4096 * 2
    x1 = jax.random.normal(kx, (B, C_in, L1), dtype=jnp.float32)
    out1 = jax.block_until_ready(outconv(x1, weight, bias))
    ref1 = jnp.einsum("oi,bil->bol", weight[:, :, 0], x1) + bias[None, :, None]
    assert out1.shape == (B, C_out, L1)
    assert jnp.allclose(out1, ref1, atol=1e-5, rtol=1e-5)

    # Also exercise the tiled + padded path (L not a multiple of the tile).
    L2 = 1536 + 37
    x2 = jax.random.normal(kx, (B, C_in, L2), dtype=jnp.float32)
    out2 = jax.block_until_ready(outconv(x2, weight, bias))
    ref2 = jnp.einsum("oi,bil->bol", weight[:, :, 0], x2) + bias[None, :, None]
    assert out2.shape == (B, C_out, L2)
    assert jnp.allclose(out2, ref2, atol=1e-5, rtol=1e-5)

    print("KERNEL_OK")
</pallas_src>

<mosaic_0001>
module attributes {stable_mosaic.version = 11 : i64} {
  func.func @_outconv_kernel(%arg0: i32, %arg1: i32, %arg2: memref<8x4xf32, #tpu.memory_space<vmem>>, %arg3: memref<8x1xf32, #tpu.memory_space<vmem>>, %arg4: memref<1x4x16xf32, #tpu.memory_space<vmem>>, %arg5: memref<1x8x16xf32, #tpu.memory_space<vmem>>) attributes {dimension_semantics = [#tpu.dimension_semantics<parallel>, #tpu.dimension_semantics<parallel>], iteration_bounds = array<i64: 2, 1>, scalar_prefetch = 0 : i64, scratch_operands = 0 : i64, tpu.core_type = #tpu.core_type<tc>, window_params = [{pipeline_mode = #tpu.pipeline_mode<synchronous>, transform_indices = @transform_0, window_bounds = array<i64: 8, 4>}, {pipeline_mode = #tpu.pipeline_mode<synchronous>, transform_indices = @transform_1, window_bounds = array<i64: 8, 1>}, {transform_indices = @transform_2, window_bounds = array<i64: 1, 4, 16>}, {transform_indices = @transform_3, window_bounds = array<i64: 1, 8, 16>}]} {
    %c0 = arith.constant 0 : index
    %c0_0 = arith.constant 0 : index
    %0 = vector.load %arg2[%c0, %c0_0] : memref<8x4xf32, #tpu.memory_space<vmem>>, vector<8x4xf32>
    %c0_1 = arith.constant 0 : index
    %c0_2 = arith.constant 0 : index
    %c0_3 = arith.constant 0 : index
    %1 = vector.load %arg4[%c0_1, %c0_2, %c0_3] : memref<1x4x16xf32, #tpu.memory_space<vmem>>, vector<1x4x16xf32>
    %2 = vector.shape_cast %1 : vector<1x4x16xf32> to vector<4x16xf32>
    %cst = arith.constant dense<0.000000e+00> : vector<8x16xf32>
    %3 = tpu.matmul %0, %2, %cst {dimension_numbers = #tpu.dot_dimension_numbers<[1], [0], [0], [1], [0, 0, 1, 1], [], []>} : vector<8x4xf32>, vector<4x16xf32>, vector<8x16xf32> -> vector<8x16xf32>
    %c0_4 = arith.constant 0 : index
    %c0_5 = arith.constant 0 : index
    %4 = vector.load %arg3[%c0_4, %c0_5] : memref<8x1xf32, #tpu.memory_space<vmem>>, vector<8x1xf32>
    %5 = vector.broadcast %4 : vector<8x1xf32> to vector<8x16xf32>
    %6 = arith.addf %3, %5 : vector<8x16xf32>
    %c0_6 = arith.constant 0 : index
    %c0_7 = arith.constant 0 : index
    %c0_8 = arith.constant 0 : index
    %7 = vector.load %arg5[%c0_6, %c0_7, %c0_8] : memref<1x8x16xf32, #tpu.memory_space<vmem>>, vector<1x8x16xf32>
    %8 = vector.shape_cast %7 : vector<1x8x16xf32> to vector<8x16xf32>
    %9 = vector.shape_cast %6 : vector<8x16xf32> to vector<1x8x16xf32>
    tpu.vector_store %arg5[%c0_6, %c0_7, %c0_8], %9 {strides = array<i32>} : memref<1x8x16xf32, #tpu.memory_space<vmem>>, vector<1x8x16xf32>,
    return
  }
  func.func @transform_0(%arg0: i32, %arg1: i32) -> (i32, i32) {
    %c0_i32 = arith.constant 0 : i32
    %c0_i32_0 = arith.constant 0 : i32
    %c0_i32_1 = arith.constant 0 : i32
    return %c0_i32, %c0_i32_0 : i32, i32
  }
  func.func @transform_1(%arg0: i32, %arg1: i32) -> (i32, i32) {
    %c0_i32 = arith.constant 0 : i32
    %c0_i32_0 = arith.constant 0 : i32
    %c0_i32_1 = arith.constant 0 : i32
    return %c0_i32, %c0_i32_0 : i32, i32
  }
  func.func @transform_2(%arg0: i32, %arg1: i32) -> (i32, i32, i32) {
    %c0_i32 = arith.constant 0 : i32
    %c0_i32_0 = arith.constant 0 : i32
    return %arg0, %c0_i32, %arg1 : i32, i32, i32
  }
  func.func @transform_3(%arg0: i32, %arg1: i32) -> (i32, i32, i32) {
    %c0_i32 = arith.constant 0 : i32
    %c0_i32_0 = arith.constant 0 : i32
    return %arg0, %c0_i32, %arg1 : i32, i32, i32
  }
}

</mosaic_0001>

<llo_original>
// kernel: tpu_custom_call.1
$region0: #{tpu_custom_call.1}
  #allocation0 [shape = 'u32[]', space=smem, size = 0x4, offset = 0x4, fixed_abs, tag = 'smem constant byte address 0x4 - core index']
  #allocation1 [shape = 'u32[144,128]{1,0:T(1,128)}', space=vmem, size = 0x12000, scoped, tag = 'internal scratch']
  %s0 = inlined_call_operand.hbm [shape: f32[8,4], index: 0, kind: input, shape index: {}]
  %s1 = inlined_call_operand.hbm [shape: f32[8,1], index: 1, kind: input, shape index: {}]
  %s2 = inlined_call_operand.hbm [shape: f32[2,4,16], index: 2, kind: input, shape index: {}]
  %s3 = inlined_call_operand.hbm [shape: f32[2,8,16], index: 3, kind: output, shape index: {}]
  %s4 = sld [smem:[#allocation0]]
  $region57: #{tpu_custom_call.1} parent=0
    _
  %s6 = ssub.s32 1, %s4
  %s7 = scalar_select 0, %s6, %s4
  $region1: #{tpu_custom_call.1} parent=0
    #allocation2 [shape = 'u8[4096]{0}', space=vmem, size = 0x1000, scoped, tag = 'input window, operand 0, single buffered']
    #allocation3 [shape = 's32[2]{0}', space=sflag, size = 0x8, scoped, tag = 'scoped memory for tpu_custom_call.1']
    #allocation4 [shape = 's32[2]{0}', space=sflag, size = 0x8, scoped, tag = 'scoped memory for tpu_custom_call.1']
    #allocation5 [shape = 'u8[4096]{0}', space=vmem, size = 0x1000, scoped, tag = 'input window, operand 1, single buffered']
    #allocation6 [shape = 's32[1]{0}', space=sflag, size = 0x4, scoped, tag = 'scoped memory for tpu_custom_call.1']
    #allocation7 [shape = 'u8[4096]{0}', space=vmem, size = 0x1000, scoped, tag = 'input window, operand 2']
    #allocation8 [shape = 'u8[8192]{0}', space=vmem, size = 0x2000, scoped, tag = 'output window, operand 0']
    %8 = vsyncpa [#allocation3], 0
    %9 = vsyncpa [#allocation6], 0
    %10 = vsyncpa [#allocation4], 0
    %s11 = scalar_lea.sflag [#allocation4], 1
    %12 = vsyncpa %s11, 0
    loop: start=0, step=1, limit=4
    $region2: #{tpu_custom_call.1} parent=1 // loop_pre_header
      _
    $region3: #{tpu_custom_call.1} parent=1 // loop_header
      %s14 = sphi 0, %s18
      %p15 = scmp.ge.s32.totalorder %s14, 4
      %s21 = sphi 0, %s33
      %s22 = sphi 0, %s29
      %s23 = sphi 0, %s21
      %s24 = sphi 0, %s22
      %s25 = sphi 0, %s23
      %s26 = sphi 0, %s24
      %s34 = sphi 0, %s34
      %s36 = sphi 0, %s34
      %s37 = sphi 0, %s36
      %s51 = sphi 0, %s37
      %s55 = sphi 0, %s55
      %s57 = sphi 0, %s55
      %s58 = sphi 0, %s57
      %s72 = sphi 0, %s58
      %s80 = sphi 0, %s82
      %s83 = sphi 0, %s80
      %s84 = sphi 0, %s83
      %s100 = sphi 0, %s84
      %s108 = sphi 0, %s110
      %s111 = sphi 0, %s108
      %s112 = sphi 0, %s111
      %s128 = sphi 0, %s112
    $region4: #{tpu_custom_call.1} parent=1 // loop_header_branch
      %17 = sbr.rel (%p15) target = $region8
    $region5: #{tpu_custom_call.1} parent=1 // loop_body
      %s19 = ssub.s32 %s14, 1
      %s20 = ssub.s32 %s14, 2
      %s27 = sadd.s32 1, %s22
      %p28 = scmp.ge.s32.totalorder %s27, 1
      %s29 = scalar_select %p28, 0, %s27
      %s30 = sadd.s32 1, %s21
      %s31 = scalar_select %p28, %s30, %s21
      %p32 = scmp.ge.s32.totalorder %s31, 2
      %s33 = scalar_select %p32, 0, %s31
      %s35 = sadd.s32 %s34, 1
      %p38 = scmp.eq.s32.totalorder %s14, 1
      %p39 = scmp.ne.s32.totalorder %s34, %s36
      %p40 = scmp.eq.s32.totalorder %s14, 0
      %p41 = por %p39, %p40
      %p42 = scmp.ne.s32.totalorder %s34, %s36
      %p43 = scmp.eq.s32.totalorder %s19, 1
      %p44 = por %p42, %p43
      %p45 = scmp.ne.s32.totalorder %s36, %s37
      %p46 = scmp.eq.s32.totalorder %s19, 0
      %p47 = por %p45, %p46
      %p48 = scmp.ne.s32.totalorder %s36, %s37
      %p49 = scmp.eq.s32.totalorder %s20, 1
      %p50 = por %p48, %p49
      %p52 = scmp.ne.s32.totalorder %s37, %s51
      %p53 = scmp.eq.s32.totalorder %s20, 0
      %p54 = por %p52, %p53
      %s56 = sadd.s32 %s55, 1
      %p59 = scmp.eq.s32.totalorder %s14, 1
      %p60 = scmp.ne.s32.totalorder %s55, %s57
      %p61 = scmp.eq.s32.totalorder %s14, 0
      %p62 = por %p60, %p61
      %p63 = scmp.ne.s32.totalorder %s55, %s57
      %p64 = scmp.eq.s32.totalorder %s19, 1
      %p65 = por %p63, %p64
      %p66 = scmp.ne.s32.totalorder %s57, %s58
      %p67 = scmp.eq.s32.totalorder %s19, 0
      %p68 = por %p66, %p67
      %p69 = scmp.ne.s32.totalorder %s57, %s58
      %p70 = scmp.eq.s32.totalorder %s20, 1
      %p71 = por %p69, %p70
      %p73 = scmp.ne.s32.totalorder %s58, %s72
      %p74 = scmp.eq.s32.totalorder %s20, 0
      %p75 = por %p73, %p74
      %s76 = ssub.s32 %s21, %s33
      %s77 = ssub.s32 %s22, %s29
      %s78 = sor.u32 %s76, %s77
      %p79 = scmp.eq.s32.totalorder %s78, 0
      %s81 = sadd.s32 %s80, 1
      %s82 = scalar_select %p79, %s80, %s81
      %p85 = pneg %p79
      %p86 = scmp.eq.s32.totalorder %s14, 1
      %p87 = por %p85, %p86
      %p88 = scmp.ne.s32.totalorder %s80, %s83
      %p89 = scmp.eq.s32.totalorder %s14, 0
      %p90 = por %p88, %p89
      %p91 = scmp.ne.s32.totalorder %s80, %s83
      %p92 = scmp.eq.s32.totalorder %s19, 1
      %p93 = por %p91, %p92
      %p94 = scmp.ne.s32.totalorder %s83, %s84
      %p95 = scmp.eq.s32.totalorder %s19, 0
      %p96 = por %p94, %p95
      %p97 = scmp.ne.s32.totalorder %s83, %s84
      %p98 = scmp.eq.s32.totalorder %s20, 1
      %p99 = por %p97, %p98
      %p101 = scmp.ne.s32.totalorder %s84, %s100
      %p102 = scmp.eq.s32.totalorder %s20, 0
      %p103 = por %p101, %p102
      %s104 = ssub.s32 %s21, %s33
      %s105 = ssub.s32 %s22, %s29
      %s106 = sor.u32 %s104, %s105
      %p107 = scmp.eq.s32.totalorder %s106, 0
      %s109 = sadd.s32 %s108, 1
      %s110 = scalar_select %p107, %s108, %s109
      %p113 = pneg %p107
      %p114 = scmp.eq.s32.totalorder %s14, 1
      %p115 = por %p113, %p114
      %p116 = scmp.ne.s32.totalorder %s108, %s111
      %p117 = scmp.eq.s32.totalorder %s14, 0
      %p118 = por %p116, %p117
      %p119 = scmp.ne.s32.totalorder %s108, %s111
      %p120 = scmp.eq.s32.totalorder %s19, 1
      %p121 = por %p119, %p120
      %p122 = scmp.ne.s32.totalorder %s111, %s112
      %p123 = scmp.eq.s32.totalorder %s19, 0
      %p124 = por %p122, %p123
      %p125 = scmp.ne.s32.totalorder %s111, %s112
      %p126 = scmp.eq.s32.totalorder %s20, 1
      %p127 = por %p125, %p126
      %p129 = scmp.ne.s32.totalorder %s112, %s128
      %p130 = scmp.eq.s32.totalorder %s20, 0
      %p131 = por %p129, %p130
      %p132 = scmp.le.s32.totalorder 1, %s14
      %p133 = scmp.lt.s32.totalorder %s14, 3
      %p134 = pnand %p132, %p133
      %p135 = pneg %p134
      // Predicated region
      $region9: #{tpu_custom_call.1} parent=5 // pred_check
        _
      $region10: #{tpu_custom_call.1} parent=5 // pred_check_branch
        %137 = sbr.rel (%p134) target = $region12
      $region11: #{tpu_custom_call.1} parent=5 // pred_region
        %s138 = ssub.s32 %s14, 1
        // Predicated region
        $region13: #{tpu_custom_call.1} parent=11 // pred_check
          %p139 = pneg %p47
        $region14: #{tpu_custom_call.1} parent=11 // pred_check_branch
          %141 = sbr.rel (%p139) target = $region16
        $region15: #{tpu_custom_call.1} parent=11 // pred_region
          %s143 = ssub.s32 128, 128
          %144 = vsyncadd [#allocation3], %s143
          %s146 = sshll.u32 [#allocation2], 4
          %s147 = int_to_ptr.vmem [resolvable:$true] %s146
          %149 = dma.hbm_to_vmem [thread:$0]  %s0, 128, %s147, [#allocation3]
        $region16: #{tpu_custom_call.1} parent=11 // pred_fallthru
          _
        // Predicated region
        $region17: #{tpu_custom_call.1} parent=11 // pred_check
          %p150 = pneg %p68
        $region18: #{tpu_custom_call.1} parent=11 // pred_check_branch
          %152 = sbr.rel (%p150) target = $region20
        $region19: #{tpu_custom_call.1} parent=11 // pred_region
          %s154 = ssub.s32 128, 128
          %155 = vsyncadd [#allocation6], %s154
          %s157 = sshll.u32 [#allocation5], 4
          %s158 = int_to_ptr.vmem [resolvable:$true] %s157
          %160 = dma.hbm_to_vmem [thread:$0]  %s1, 128, %s158, [#allocation6]
        $region20: #{tpu_custom_call.1} parent=11 // pred_fallthru
          _
      $region12: #{tpu_custom_call.1} parent=5 // pred_fallthru
        _
      %p161 = scmp.lt.s32.totalorder %s14, 2
      // Predicated region
      $region21: #{tpu_custom_call.1} parent=5 // pred_check
        %p162 = pneg %p161
      $region22: #{tpu_custom_call.1} parent=5 // pred_check_branch
        %164 = sbr.rel (%p162) target = $region24
      $region23: #{tpu_custom_call.1} parent=5 // pred_region
        // Predicated region
        $region25: #{tpu_custom_call.1} parent=23 // pred_check
          %p165 = pneg %p90
        $region26: #{tpu_custom_call.1} parent=23 // pred_check_branch
          %167 = sbr.rel (%p165) target = $region28
        $region27: #{tpu_custom_call.1} parent=23 // pred_region
          %s168 = sand.u32 %s14, 1
          %s169 = scalar_lea.sflag [#allocation3], %s168
          %s170 = sand.u32 %s80, 1
          %s171 = smul.addr %s170, 4
          %s172 = scalar_lea.vmem [#allocation7], %s171
          %s174 = ssub.s32 64, 64
          %175 = vsyncadd %s169, %s174
          %s176 = sadd.s32 %s22, %s21
          %s177 = smul.addr %s176, 64
          %s178 = scalar_lea.hbm %s2, %s177
          %s180 = sshll.u32 %s172, 4
          %s181 = int_to_ptr.vmem [resolvable:$true] %s180
          %183 = dma.hbm_to_vmem [thread:$0]  %s178, 64, %s181, %s169
        $region28: #{tpu_custom_call.1} parent=23 // pred_fallthru
          _
      $region24: #{tpu_custom_call.1} parent=5 // pred_fallthru
        _
      %p184 = scmp.le.s32.totalorder 1, %s14
      %p185 = scmp.lt.s32.totalorder %s14, 3
      %p186 = pnand %p184, %p185
      %p187 = pneg %p186
      // Predicated region
      $region29: #{tpu_custom_call.1} parent=5 // pred_check
        _
      $region30: #{tpu_custom_call.1} parent=5 // pred_check_branch
        %189 = sbr.rel (%p186) target = $region32
      $region31: #{tpu_custom_call.1} parent=5 // pred_region
        %s190 = ssub.s32 %s14, 1
        // Predicated region
        $region33: #{tpu_custom_call.1} parent=31 // pred_check
          %p191 = pneg %p47
        $region34: #{tpu_custom_call.1} parent=31 // pred_check_branch
          %193 = sbr.rel (%p191) target = $region36
        $region35: #{tpu_custom_call.1} parent=31 // pred_region
          %194 = dma.done [#allocation3], 128
        $region36: #{tpu_custom_call.1} parent=31 // pred_fallthru
          _
        // Predicated region
        $region37: #{tpu_custom_call.1} parent=31 // pred_check
          %p195 = pneg %p68
        $region38: #{tpu_custom_call.1} parent=31 // pred_check_branch
          %197 = sbr.rel (%p195) target = $region40
        $region39: #{tpu_custom_call.1} parent=31 // pred_region
          %198 = dma.done [#allocation6], 128
        $region40: #{tpu_custom_call.1} parent=31 // pred_fallthru
          _
        %s199 = sand.u32 %s19, 1
        %s200 = scalar_lea.sflag [#allocation3], %s199
        %s201 = sand.u32 %s83, 1
        %s202 = smul.addr %s201, 4
        %s203 = scalar_lea.vmem [#allocation7], %s202
        // Predicated region
        $region41: #{tpu_custom_call.1} parent=31 // pred_check
          %p204 = pneg %p96
        $region42: #{tpu_custom_call.1} parent=31 // pred_check_branch
          %206 = sbr.rel (%p204) target = $region44
        $region43: #{tpu_custom_call.1} parent=31 // pred_region
          %207 = dma.done %s200, 64
        $region44: #{tpu_custom_call.1} parent=31 // pred_fallthru
          _
        %p208 = pneg %p47
        %p209 = pneg %p44
        %p210 = pneg %p68
        %p211 = pneg %p65
        %s212 = sand.u32 %s19, 1
        %s213 = scalar_lea.sflag [#allocation3], %s212
        %s214 = sand.u32 %s83, 1
        %s215 = smul.addr %s214, 4
        %s216 = scalar_lea.vmem [#allocation7], %s215
        %p217 = pneg %p96
        %p218 = pneg %p93
        %p219 = pneg %p124
        %p220 = pneg %p121
        %s221 = sand.u32 %s111, 1
        %s222 = scalar_lea.sflag [#allocation4], %s221
        %s223 = sand.u32 %s111, 1
        %s224 = smul.addr %s223, 8
        %s225 = scalar_lea.vmem [#allocation8], %s224
        %v226 = vld [vmem:[#allocation2] sm:$0xff]
        %v227 = vld [vmem:[%s203] sm:$0xf]
        %v228 = vld [vmem:[#allocation5] sm:$0xff]
        %230 = vset.pattern.permute.xlu0 0
        %231 = vperm.xlu0 %230, %v228
        %v232 = vpop.permute.xlu0 %231
        %vm234 = vcmask 31744
        %v236 = vsel %vm234, %v226, 0
        %vm238 = vcmask 1043456
        %v240 = vsel %vm238, %v227, 0
        %242 = vmatprep.subr.mxu0 0.0
        %243 = vmatpush1.msra.mxu0 %v240
        %244 = vmatprep.subr.mxu0 0.0
        %245 = vmatpush1.msra.mxu0 0.0
        %246 = vmatprep.subr.mxu0 0.0
        %247 = vmatpush1.msra.mxu0 0.0
        %248 = vmatprep.subr.mxu0 0.0
        %249 = vmatpush1.msra.mxu0 0.0
        %250 = vmatprep.subr.mxu0 0.0
        %251 = vmatpush1.msra.mxu0 0.0
        %252 = vmatprep.subr.mxu0 0.0
        %253 = vmatpush1.msra.mxu0 0.0
        %254 = vmatprep.subr.mxu0 0.0
        %255 = vmatpush1.msra.mxu0 0.0
        %256 = vmatprep.subr.mxu0 0.0
        %257 = vmatpush1.msra.mxu0 0.0
        %258 = vmatprep.subr.mxu0 0.0
        %259 = vmatpush1.msra.mxu0 0.0
        %260 = vmatprep.subr.mxu0 0.0
        %261 = vmatpush1.msra.mxu0 0.0
        %262 = vmatprep.subr.mxu0 0.0
        %263 = vmatpush1.msra.mxu0 0.0
        %264 = vmatprep.subr.mxu0 0.0
        %265 = vmatpush1.msra.mxu0 0.0
        %266 = vmatprep.subr.mxu0 0.0
        %267 = vmatpush1.msra.mxu0 0.0
        %268 = vmatprep.subr.mxu0 0.0
        %269 = vmatpush1.msra.mxu0 0.0
        %270 = vmatprep.subr.mxu0 0.0
        %271 = vmatpush1.msra.mxu0 0.0
        %272 = vmatprep.subr.mxu0 0.0
        %273 = vmatpush1.msra.mxu0 0.0
        %274 = vmatprep.subr.mxu0 0.0
        %275 = vmatpush1.msra.mxu0 0.0
        %276 = vmatprep.subr.mxu0 0.0
        %277 = vmatpush1.msra.mxu0 0.0
        %278 = vmatprep.subr.mxu0 0.0
        %279 = vmatpush1.msra.mxu0 0.0
        %280 = vmatprep.subr.mxu0 0.0
        %281 = vmatpush1.msra.mxu0 0.0
        %282 = vmatprep.subr.mxu0 0.0
        %283 = vmatpush1.msra.mxu0 0.0
        %284 = vmatprep.subr.mxu0 0.0
        %285 = vmatpush1.msra.mxu0 0.0
        %286 = vmatprep.subr.mxu0 0.0
        %287 = vmatpush1.msra.mxu0 0.0
        %288 = vmatprep.subr.mxu0 0.0
        %289 = vmatpush1.msra.mxu0 0.0
        %290 = vmatprep.subr.mxu0 0.0
        %291 = vmatpush1.msra.mxu0 0.0
        %292 = vmatprep.subr.mxu0 0.0
        %293 = vmatpush1.msra.mxu0 0.0
        %294 = vmatprep.subr.mxu0 0.0
        %295 = vmatpush1.msra.mxu0 0.0
        %296 = vmatprep.subr.mxu0 0.0
        %297 = vmatpush1.msra.mxu0 0.0
        %298 = vmatprep.subr.mxu0 0.0
        %299 = vmatpush1.msra.mxu0 0.0
        %300 = vmatprep.subr.mxu0 0.0
        %301 = vmatpush1.msra.mxu0 0.0
        %302 = vmatprep.subr.mxu0 0.0
        %303 = vmatpush1.msra.mxu0 0.0
        %304 = vmatprep.subr.mxu0 0.0
        %305 = vmatpush1.msra.mxu0 0.0
        %306 = vmatprep.mubr.f32.mxu0 0.0
        %307 = vmatmul.mubr.f32.gmra.mrb[0].mxu0 %v236
        %v308 = vpop.f32.mrb[0].mxu0
        %v309 = vadd.f32 %v232, %v308
        %v310 = vpop.f32.mrb[0].mxu0
        %311 = vdwg.mxu0
        %vm312 = vcmask 130048
        %313 = vst.msk [vmem:[%s225] sm:$0xff] %vm312, %v309
        %s314 = sand.u32 %s111, 1
        %s315 = scalar_lea.sflag [#allocation4], %s314
        %s316 = sand.u32 %s111, 1
        %s317 = smul.addr %s316, 8
        %s318 = scalar_lea.vmem [#allocation8], %s317
        // Predicated region
        $region45: #{tpu_custom_call.1} parent=31 // pred_check
          %p319 = pneg %p121
        $region46: #{tpu_custom_call.1} parent=31 // pred_check_branch
          %321 = sbr.rel (%p319) target = $region48
        $region47: #{tpu_custom_call.1} parent=31 // pred_region
          %s323 = ssub.s32 128, 128
          %324 = vsyncadd %s315, %s323
          %s325 = sadd.s32 %s24, %s23
          %s326 = smul.addr %s325, 128
          %s327 = scalar_lea.hbm %s3, %s326
          %s329 = sshll.u32 %s318, 4
          %s330 = int_to_ptr.vmem [resolvable:$true] %s329
          %332 = dma.vmem_to_hbm [thread:$0]  %s330, 128, %s327, %s315
        $region48: #{tpu_custom_call.1} parent=31 // pred_fallthru
          _
      $region32: #{tpu_custom_call.1} parent=5 // pred_fallthru
        _
      %p333 = scmp.le.s32.totalorder 2, %s14
      // Predicated region
      $region49: #{tpu_custom_call.1} parent=5 // pred_check
        %p334 = pneg %p333
      $region50: #{tpu_custom_call.1} parent=5 // pred_check_branch
        %336 = sbr.rel (%p334) target = $region52
      $region51: #{tpu_custom_call.1} parent=5 // pred_region
        %s337 = ssub.s32 %s14, 2
        // Predicated region
        $region53: #{tpu_custom_call.1} parent=51 // pred_check
          %p338 = pneg %p127
        $region54: #{tpu_custom_call.1} parent=51 // pred_check_branch
          %340 = sbr.rel (%p338) target = $region56
        $region55: #{tpu_custom_call.1} parent=51 // pred_region
          %s341 = sand.u32 %s112, 1
          %s342 = scalar_lea.sflag [#allocation4], %s341
          %s343 = sand.u32 %s112, 1
          %s344 = smul.addr %s343, 8
          %s345 = scalar_lea.vmem [#allocation8], %s344
          %346 = dma.done %s342, 128
        $region56: #{tpu_custom_call.1} parent=51 // pred_fallthru
          _
      $region52: #{tpu_custom_call.1} parent=5 // pred_fallthru
        _
    $region6: #{tpu_custom_call.1} parent=1 // loop_footer
      %s18 = sadd.s32 1, %s14
    $region7: #{tpu_custom_call.1} parent=1 // loop_footer_branch
      %13 = sbr.rel target = $region3
    $region8: #{tpu_custom_call.1} parent=1 // loop_exit
      _
    %347 = vsyncpa [#allocation3], 1
    %s348 = scalar_lea.sflag [#allocation3], 1
    %349 = vsyncpa %s348, 1
    %350 = vsyncpa [#allocation6], 1
    %351 = vsyncpa [#allocation4], 1
    %s352 = scalar_lea.sflag [#allocation4], 1
    %353 = vsyncpa %s352, 1

</llo_original>
